<compile_context>
chip_gen: v7x
topology: tpu7x:2x2x1
jax: 0.10.0
libtpu: 0.0.40
codegen_flags: <defaults>
</compile_context>

<pallas_src>
import jax
import jax.numpy as jnp
from jax.experimental import pallas as pl
from jax.experimental.pallas import tpu as pltpu


def _round_up(n, m):
    return ((n + m - 1) // m) * m


def shared_model_kernel(x_ref, w1_ref, b1_ref, w2_ref, b2_ref,
                        hidden_ref, out_ref):
    # fc1: (TB, In) cast to bf16 in-kernel @ (In, H)[bf16] -> f32 accumulate.
    x = x_ref[...].astype(w1_ref.dtype)
    h = jnp.dot(x, w1_ref[...], preferred_element_type=jnp.float32)
    h = jnp.maximum(h + b1_ref[...], 0.0)            # f32 bias + ReLU epilogue
    hidden_ref[...] = h.astype(hidden_ref.dtype)

    # fc_out: (TB, H)[bf16] @ (H, C_p)[bf16] -> f32 accumulate.
    o = jnp.dot(h.astype(w2_ref.dtype), w2_ref[...],
                preferred_element_type=jnp.float32)
    out_ref[...] = (o + b2_ref[...]).astype(out_ref.dtype)


def prepare_params(w1, b1, w2, b2, *, compute_dtype=jnp.bfloat16):
    """One-time parameter prep (do NOT call per forward pass).

    Pads hidden/class dims to lane-dense multiples of 128, casts MXU weight
    operands to bf16, keeps biases in f32.  The contraction dim In is left
    unpadded.  Returns (padded_params, (H, C)).
    """
    In, H = w1.shape
    _, C = w2.shape
    H_p = _round_up(H, 128)
    C_p = _round_up(C, 128)
    w1_p = jnp.zeros((In, H_p), compute_dtype).at[:, :H].set(
        w1.astype(compute_dtype))
    b1_p = jnp.zeros((1, H_p), jnp.float32).at[0, :H].set(
        b1.astype(jnp.float32))
    w2_p = jnp.zeros((H_p, C_p), compute_dtype).at[:H, :C].set(
        w2.astype(compute_dtype))
    b2_p = jnp.zeros((1, C_p), jnp.float32).at[0, :C].set(
        b2.astype(jnp.float32))
    return (w1_p, b1_p, w2_p, b2_p), (H, C)


def shared_model_forward(x, prepared_params, dims, *, tile_b=512):
    """Fused fc1 -> ReLU -> fc_out. Returns (hidden, logits) in x.dtype."""
    w1_p, b1_p, w2_p, b2_p = prepared_params
    H, C = dims
    B, In = x.shape
    In_w, H_p = w1_p.shape
    _, C_p = w2_p.shape
    assert In == In_w, "input feature dim mismatch with prepared params"
    out_dtype = x.dtype

    # Batch tiling: one small tile for tiny batches; otherwise a large tile
    # (multiple of 256 => also 128) so the grid pipelines well and the per-step
    # overhead is amortized.  B_p - B padding stays < TB.
    if B <= tile_b:
        TB = _round_up(B, 8)
    else:
        TB = tile_b
    B_p = _round_up(B, TB)
    x_in = x if B_p == B else jnp.pad(x, ((0, B_p - B), (0, 0)))

    grid = (B_p // TB,)

    w_itm = jnp.dtype(w1_p.dtype).itemsize
    o_itm = jnp.dtype(out_dtype).itemsize
    x_itm = jnp.dtype(x.dtype).itemsize
    flops = 2 * B_p * (In * H_p + H_p * C_p)
    bytes_accessed = (B_p * In * x_itm                      # x read
                      + In * H_p * w_itm + H_p * C_p * w_itm  # weights
                      + (H_p + C_p) * 4                       # biases
                      + B_p * H_p * o_itm + B_p * C_p * o_itm)  # outputs

    hidden_p, out_p = pl.pallas_call(
        shared_model_kernel,
        out_shape=(
            jax.ShapeDtypeStruct((B_p, H_p), out_dtype),
            jax.ShapeDtypeStruct((B_p, C_p), out_dtype),
        ),
        grid_spec=pltpu.PrefetchScalarGridSpec(
            num_scalar_prefetch=0,
            grid=grid,
            in_specs=[
                pl.BlockSpec((TB, In), lambda i: (i, 0)),     # x: blocked batch
                pl.BlockSpec((In, H_p), lambda i: (0, 0)),    # w1: VMEM-resident
                pl.BlockSpec((1, H_p), lambda i: (0, 0)),     # b1
                pl.BlockSpec((H_p, C_p), lambda i: (0, 0)),   # w2: VMEM-resident
                pl.BlockSpec((1, C_p), lambda i: (0, 0)),     # b2
            ],
            out_specs=[
                pl.BlockSpec((TB, H_p), lambda i: (i, 0)),
                pl.BlockSpec((TB, C_p), lambda i: (i, 0)),
            ],
        ),
        compiler_params=pltpu.CompilerParams(
            dimension_semantics=("parallel",)),
        cost_estimate=pl.CostEstimate(
            flops=flops, transcendentals=0, bytes_accessed=bytes_accessed),
    )(x_in, w1_p, b1_p, w2_p, b2_p)

    hidden = hidden_p[:B, :H]
    out = out_p[:B, :C]
    return hidden, out


def init_params(key, input_size=392, hidden_size=256, num_classes=10,
                dtype=jnp.float32):
    """Deterministic init mirroring nn.Linear's U(-1/sqrt(in), 1/sqrt(in))."""
    k1, k2, k3, k4 = jax.random.split(key, 4)
    lim1 = 1.0 / jnp.sqrt(jnp.asarray(input_size, dtype))
    lim2 = 1.0 / jnp.sqrt(jnp.asarray(hidden_size, dtype))
    # Stored as (in, out) = transpose of PyTorch's (out, in) weight.
    w1 = jax.random.uniform(k1, (input_size, hidden_size), dtype,
                            minval=-lim1, maxval=lim1)
    b1 = jax.random.uniform(k2, (hidden_size,), dtype,
                            minval=-lim1, maxval=lim1)
    w2 = jax.random.uniform(k3, (hidden_size, num_classes), dtype,
                            minval=-lim2, maxval=lim2)
    b2 = jax.random.uniform(k4, (num_classes,), dtype,
                            minval=-lim2, maxval=lim2)
    return w1, b1, w2, b2


if __name__ == "__main__":
    key = jax.random.PRNGKey(0)
    k_x, k_p = jax.random.split(key)

    batch = 8
    input_size, hidden_size, num_classes = 392, 256, 10

    x = jax.random.normal(k_x, (batch, input_size), jnp.float32)
    w1, b1, w2, b2 = init_params(k_p, input_size, hidden_size, num_classes)

    # One-time param prep (padding + bf16 cast happen here, not per call).
    prepared, dims = prepare_params(w1, b1, w2, b2)
    prepared = jax.block_until_ready(prepared)

    hidden, out = shared_model_forward(x, prepared, dims)
    jax.block_until_ready((hidden, out))

    assert hidden.shape == (batch, hidden_size)
    assert out.shape == (batch, num_classes)
    assert hidden.dtype == x.dtype and out.dtype == x.dtype

    # Reference 1: exactly what the kernel computes (bf16 operands, f32 accum).
    xb = x.astype(jnp.bfloat16).astype(jnp.float32)
    w1b = w1.astype(jnp.bfloat16).astype(jnp.float32)
    w2b = w2.astype(jnp.bfloat16).astype(jnp.float32)
    h_ref_bf = jnp.maximum(xb @ w1b + b1, 0.0)
    o_ref_bf = h_ref_bf.astype(jnp.bfloat16).astype(jnp.float32) @ w2b + b2
    assert jnp.allclose(hidden, h_ref_bf, atol=1e-2, rtol=1e-2)
    assert jnp.allclose(out, o_ref_bf, atol=1e-2, rtol=1e-2)

    # Reference 2: pure f32 PyTorch semantics (looser tol for bf16 MXU inputs).
    h_ref = jnp.maximum(x @ w1 + b1, 0.0)
    o_ref = h_ref @ w2 + b2
    assert jnp.allclose(hidden, h_ref, atol=5e-2, rtol=5e-2)
    assert jnp.allclose(out, o_ref, atol=5e-2, rtol=5e-2)

    print("KERNEL_OK")
</pallas_src>

<mosaic_0001>
module attributes {stable_mosaic.version = 11 : i64} {
  func.func @shared_model_kernel(%arg0: i32, %arg1: memref<8x392xf32, #tpu.memory_space<vmem>>, %arg2: memref<392x256xbf16, #tpu.memory_space<vmem>>, %arg3: memref<1x256xf32, #tpu.memory_space<vmem>>, %arg4: memref<256x128xbf16, #tpu.memory_space<vmem>>, %arg5: memref<1x128xf32, #tpu.memory_space<vmem>>, %arg6: memref<8x256xf32, #tpu.memory_space<vmem>>, %arg7: memref<8x128xf32, #tpu.memory_space<vmem>>) attributes {dimension_semantics = [#tpu.dimension_semantics<parallel>], iteration_bounds = array<i64: 1>, scalar_prefetch = 0 : i64, scratch_operands = 0 : i64, tpu.core_type = #tpu.core_type<tc>, window_params = [{transform_indices = @transform_0, window_bounds = array<i64: 8, 392>}, {pipeline_mode = #tpu.pipeline_mode<synchronous>, transform_indices = @transform_1, window_bounds = array<i64: 392, 256>}, {pipeline_mode = #tpu.pipeline_mode<synchronous>, transform_indices = @transform_2, window_bounds = array<i64: 1, 256>}, {pipeline_mode = #tpu.pipeline_mode<synchronous>, transform_indices = @transform_3, window_bounds = array<i64: 256, 128>}, {pipeline_mode = #tpu.pipeline_mode<synchronous>, transform_indices = @transform_4, window_bounds = array<i64: 1, 128>}, {transform_indices = @transform_5, window_bounds = array<i64: 8, 256>}, {transform_indices = @transform_6, window_bounds = array<i64: 8, 128>}]} {
    %c0 = arith.constant 0 : index
    %c0_0 = arith.constant 0 : index
    %0 = vector.load %arg1[%c0, %c0_0] : memref<8x392xf32, #tpu.memory_space<vmem>>, vector<8x392xf32>
    %1 = arith.truncf %0 : vector<8x392xf32> to vector<8x392xbf16>
    %c0_1 = arith.constant 0 : index
    %c0_2 = arith.constant 0 : index
    %2 = vector.load %arg2[%c0_1, %c0_2] : memref<392x256xbf16, #tpu.memory_space<vmem>>, vector<392x256xbf16>
    %cst = arith.constant dense<0.000000e+00> : vector<8x256xf32>
    %3 = tpu.matmul %1, %2, %cst {dimension_numbers = #tpu.dot_dimension_numbers<[1], [0], [0], [1], [0, 0, 1, 1], [], []>} : vector<8x392xbf16>, vector<392x256xbf16>, vector<8x256xf32> -> vector<8x256xf32>
    %c0_3 = arith.constant 0 : index
    %c0_4 = arith.constant 0 : index
    %4 = vector.load %arg3[%c0_3, %c0_4] : memref<1x256xf32, #tpu.memory_space<vmem>>, vector<1x256xf32>
    %5 = vector.broadcast %4 : vector<1x256xf32> to vector<8x256xf32>
    %6 = arith.addf %3, %5 : vector<8x256xf32>
    %cst_5 = arith.constant 0.000000e+00 : f32
    %7 = vector.broadcast %cst_5 : f32 to vector<8x256xf32>
    %8 = arith.maximumf %6, %7 : vector<8x256xf32>
    %c0_6 = arith.constant 0 : index
    %c0_7 = arith.constant 0 : index
    %9 = vector.load %arg6[%c0_6, %c0_7] : memref<8x256xf32, #tpu.memory_space<vmem>>, vector<8x256xf32>
    tpu.vector_store %arg6[%c0_6, %c0_7], %8 {strides = array<i32>} : memref<8x256xf32, #tpu.memory_space<vmem>>, vector<8x256xf32>,
    %10 = arith.truncf %8 : vector<8x256xf32> to vector<8x256xbf16>
    %c0_8 = arith.constant 0 : index
    %c0_9 = arith.constant 0 : index
    %11 = vector.load %arg4[%c0_8, %c0_9] : memref<256x128xbf16, #tpu.memory_space<vmem>>, vector<256x128xbf16>
    %cst_10 = arith.constant dense<0.000000e+00> : vector<8x128xf32>
    %12 = tpu.matmul %10, %11, %cst_10 {dimension_numbers = #tpu.dot_dimension_numbers<[1], [0], [0], [1], [0, 0, 1, 1], [], []>} : vector<8x256xbf16>, vector<256x128xbf16>, vector<8x128xf32> -> vector<8x128xf32>
    %c0_11 = arith.constant 0 : index
    %c0_12 = arith.constant 0 : index
    %13 = vector.load %arg5[%c0_11, %c0_12] : memref<1x128xf32, #tpu.memory_space<vmem>>, vector<1x128xf32>
    %14 = vector.broadcast %13 : vector<1x128xf32> to vector<8x128xf32>
    %15 = arith.addf %12, %14 : vector<8x128xf32>
    %c0_13 = arith.constant 0 : index
    %c0_14 = arith.constant 0 : index
    %16 = vector.load %arg7[%c0_13, %c0_14] : memref<8x128xf32, #tpu.memory_space<vmem>>, vector<8x128xf32>
    tpu.vector_store %arg7[%c0_13, %c0_14], %15 {strides = array<i32>} : memref<8x128xf32, #tpu.memory_space<vmem>>, vector<8x128xf32>,
    return
  }
  func.func @transform_0(%arg0: i32) -> (i32, i32) {
    %c0_i32 = arith.constant 0 : i32
    %c0_i32_0 = arith.constant 0 : i32
    return %arg0, %c0_i32 : i32, i32
  }
  func.func @transform_1(%arg0: i32) -> (i32, i32) {
    %c0_i32 = arith.constant 0 : i32
    %c0_i32_0 = arith.constant 0 : i32
    %c0_i32_1 = arith.constant 0 : i32
    return %c0_i32, %c0_i32_0 : i32, i32
  }
  func.func @transform_2(%arg0: i32) -> (i32, i32) {
    %c0_i32 = arith.constant 0 : i32
    %c0_i32_0 = arith.constant 0 : i32
    %c0_i32_1 = arith.constant 0 : i32
    return %c0_i32, %c0_i32_0 : i32, i32
  }
  func.func @transform_3(%arg0: i32) -> (i32, i32) {
    %c0_i32 = arith.constant 0 : i32
    %c0_i32_0 = arith.constant 0 : i32
    %c0_i32_1 = arith.constant 0 : i32
    return %c0_i32, %c0_i32_0 : i32, i32
  }
  func.func @transform_4(%arg0: i32) -> (i32, i32) {
    %c0_i32 = arith.constant 0 : i32
    %c0_i32_0 = arith.constant 0 : i32
    %c0_i32_1 = arith.constant 0 : i32
    return %c0_i32, %c0_i32_0 : i32, i32
  }
  func.func @transform_5(%arg0: i32) -> (i32, i32) {
    %c0_i32 = arith.constant 0 : i32
    %c0_i32_0 = arith.constant 0 : i32
    return %arg0, %c0_i32 : i32, i32
  }
  func.func @transform_6(%arg0: i32) -> (i32, i32) {
    %c0_i32 = arith.constant 0 : i32
    %c0_i32_0 = arith.constant 0 : i32
    return %arg0, %c0_i32 : i32, i32
  }
}

</mosaic_0001>

<llo_original>
// kernel: tpu_custom_call.1
$region0: #{tpu_custom_call.1}
  #allocation0 [shape = 'u32[]', space=smem, size = 0x4, offset = 0x4, fixed_abs, tag = 'smem constant byte address 0x4 - core index']
  #allocation1 [shape = 'u32[144,128]{1,0:T(1,128)}', space=vmem, size = 0x12000, scoped, tag = 'internal scratch']
  %s0 = inlined_call_operand.hbm [shape: f32[8,392], index: 0, kind: input, shape index: {}]
  %s1 = inlined_call_operand.hbm [shape: bf16[392,256], index: 1, kind: input, shape index: {}]
  %s2 = inlined_call_operand.vmem [shape: f32[1,256], index: 2, kind: input, shape index: {}]
  %s3 = inlined_call_operand.hbm [shape: bf16[256,128], index: 3, kind: input, shape index: {}]
  %s4 = inlined_call_operand.vmem [shape: f32[1,128], index: 4, kind: input, shape index: {}]
  %s5 = inlined_call_operand.hbm [shape: f32[8,256], index: 5, kind: output, shape index: {0}]
  %s6 = inlined_call_operand.hbm [shape: f32[8,128], index: 6, kind: output, shape index: {1}]
  %7 = xla_tuple %s5, %s6
  %s8 = sld [smem:[#allocation0]]
  $region50: #{tpu_custom_call.1} parent=0
    _
  %s10 = ssub.s32 1, %s8
  %s11 = scalar_select 0, %s10, %s8
  $region1: #{tpu_custom_call.1} parent=0
    #allocation2 [shape = 'u8[16384]{0}', space=vmem, size = 0x4000, scoped, tag = 'input window, operand 0, single buffered']
    #allocation3 [shape = 's32[1]{0}', space=sflag, size = 0x4, scoped, tag = 'scoped memory for tpu_custom_call.1']
    #allocation4 [shape = 's32[1]{0}', space=sflag, size = 0x4, scoped, tag = 'scoped memory for tpu_custom_call.1']
    #allocation5 [shape = 'u8[200704]{0}', space=vmem, size = 0x31000, scoped, tag = 'input window, operand 1, single buffered']
    #allocation6 [shape = 's32[1]{0}', space=sflag, size = 0x4, scoped, tag = 'scoped memory for tpu_custom_call.1']
    #allocation7 [shape = 'u8[65536]{0}', space=vmem, size = 0x10000, scoped, tag = 'input window, operand 3, single buffered']
    #allocation8 [shape = 'u8[8192]{0}', space=vmem, size = 0x2000, scoped, tag = 'output window, operand 0, single buffered']
    #allocation9 [shape = 'u8[4096]{0}', space=vmem, size = 0x1000, scoped, tag = 'output window, operand 1, single buffered']
    #allocation10 [shape = 's32[1]{0}', space=sflag, size = 0x4, scoped, tag = 'scoped memory for tpu_custom_call.1']
    %12 = vsyncpa [#allocation3], 0
    %13 = vsyncpa [#allocation6], 0
    %14 = vsyncpa [#allocation4], 0
    %15 = vsyncpa [#allocation10], 0
    // Predicated region
    $region2: #{tpu_custom_call.1} parent=1 // pred_check
      _
    $region3: #{tpu_custom_call.1} parent=1 // pred_check_branch
      %17 = sbr.rel (0) target = $region5
    $region4: #{tpu_custom_call.1} parent=1 // pred_region
      %s19 = ssub.s32 512, 512
      %20 = vsyncadd [#allocation3], %s19
      %s22 = sshll.u32 [#allocation2], 4
      %s23 = int_to_ptr.vmem [resolvable:$true] %s22
      %25 = dma.hbm_to_vmem [thread:$0]  %s0, 512, %s23, [#allocation3]
    $region5: #{tpu_custom_call.1} parent=1 // pred_fallthru
      _
    // Predicated region
    $region6: #{tpu_custom_call.1} parent=1 // pred_check
      _
    $region7: #{tpu_custom_call.1} parent=1 // pred_check_branch
      %27 = sbr.rel (0) target = $region9
    $region8: #{tpu_custom_call.1} parent=1 // pred_region
      %s29 = ssub.s32 6272, 6272
      %30 = vsyncadd [#allocation6], %s29
      %s31 = sshll.u32 [#allocation5], 4
      %s32 = int_to_ptr.vmem [resolvable:$true] %s31
      %37 = dma.hbm_to_vmem [thread:$0]  %s1, 6272, %s32, [#allocation6], 128, 128, 8
    $region9: #{tpu_custom_call.1} parent=1 // pred_fallthru
      _
    // Predicated region
    $region10: #{tpu_custom_call.1} parent=1 // pred_check
      _
    $region11: #{tpu_custom_call.1} parent=1 // pred_check_branch
      %39 = sbr.rel (0) target = $region13
    $region12: #{tpu_custom_call.1} parent=1 // pred_region
      _
    $region13: #{tpu_custom_call.1} parent=1 // pred_fallthru
      _
    // Predicated region
    $region14: #{tpu_custom_call.1} parent=1 // pred_check
      _
    $region15: #{tpu_custom_call.1} parent=1 // pred_check_branch
      %41 = sbr.rel (0) target = $region17
    $region16: #{tpu_custom_call.1} parent=1 // pred_region
      %s43 = ssub.s32 2048, 2048
      %44 = vsyncadd [#allocation6], %s43
      %s45 = sshll.u32 [#allocation7], 4
      %s46 = int_to_ptr.vmem [resolvable:$true] %s45
      %51 = dma.hbm_to_vmem [thread:$0]  %s3, 2048, %s46, [#allocation6], 64, 64, 4
    $region17: #{tpu_custom_call.1} parent=1 // pred_fallthru
      _
    // Predicated region
    $region18: #{tpu_custom_call.1} parent=1 // pred_check
      _
    $region19: #{tpu_custom_call.1} parent=1 // pred_check_branch
      %53 = sbr.rel (0) target = $region21
    $region20: #{tpu_custom_call.1} parent=1 // pred_region
      _
    $region21: #{tpu_custom_call.1} parent=1 // pred_fallthru
      _
    // Predicated region
    $region22: #{tpu_custom_call.1} parent=1 // pred_check
      _
    $region23: #{tpu_custom_call.1} parent=1 // pred_check_branch
      %55 = sbr.rel (0) target = $region25
    $region24: #{tpu_custom_call.1} parent=1 // pred_region
      %56 = dma.done [#allocation3], 512
    $region25: #{tpu_custom_call.1} parent=1 // pred_fallthru
      _
    // Predicated region
    $region26: #{tpu_custom_call.1} parent=1 // pred_check
      _
    $region27: #{tpu_custom_call.1} parent=1 // pred_check_branch
      %58 = sbr.rel (0) target = $region29
    $region28: #{tpu_custom_call.1} parent=1 // pred_region
      %59 = dma.done [#allocation6], 6272
    $region29: #{tpu_custom_call.1} parent=1 // pred_fallthru
      _
    // Predicated region
    $region30: #{tpu_custom_call.1} parent=1 // pred_check
      _
    $region31: #{tpu_custom_call.1} parent=1 // pred_check_branch
      %61 = sbr.rel (0) target = $region33
    $region32: #{tpu_custom_call.1} parent=1 // pred_region
      %62 = dma.done [#allocation6], 2048
    $region33: #{tpu_custom_call.1} parent=1 // pred_fallthru
      _
    %v64 = vld [vmem:[#allocation2] sm:$0xff]
    %v65 = vld [vmem:[#allocation2 + $0x8] sm:$0xff]
    %v66 = vld [vmem:[#allocation2 + $0x10] sm:$0xff]
    %v67 = vld [vmem:[#allocation2 + $0x18] sm:$0xff]
    %v68 = vpack.c.bf16 %v64, %v64
    %v69 = vpack.c.bf16 %v65, %v65
    %v70 = vpack.c.bf16 %v66, %v66
    %v71 = vpack.c.bf16 %v67, %v67
    %v72 = vld [vmem:[#allocation5] sm:$0xff]
    %v73 = vld [vmem:[#allocation5 + $0x8] sm:$0xff]
    %v74 = vld [vmem:[#allocation5 + $0x10] sm:$0xff]
    %v75 = vld [vmem:[#allocation5 + $0x18] sm:$0xff]
    %v76 = vld [vmem:[#allocation5 + $0x20] sm:$0xff]
    %v77 = vld [vmem:[#allocation5 + $0x28] sm:$0xff]
    %v78 = vld [vmem:[#allocation5 + $0x30] sm:$0xff]
    %v79 = vld [vmem:[#allocation5 + $0x38] sm:$0xff]
    %v80 = vld [vmem:[#allocation5 + $0x40] sm:$0xff]
    %v81 = vld [vmem:[#allocation5 + $0x48] sm:$0xff]
    %v82 = vld [vmem:[#allocation5 + $0x50] sm:$0xff]
    %v83 = vld [vmem:[#allocation5 + $0x58] sm:$0xff]
    %v84 = vld [vmem:[#allocation5 + $0x60] sm:$0xff]
    %v85 = vld [vmem:[#allocation5 + $0x68] sm:$0xff]
    %v86 = vld [vmem:[#allocation5 + $0x70] sm:$0xff]
    %v87 = vld [vmem:[#allocation5 + $0x78] sm:$0xff]
    %v88 = vld [vmem:[#allocation5 + $0x80] sm:$0xff]
    %v89 = vld [vmem:[#allocation5 + $0x88] sm:$0xff]
    %v90 = vld [vmem:[#allocation5 + $0x90] sm:$0xff]
    %v91 = vld [vmem:[#allocation5 + $0x98] sm:$0xff]
    %v92 = vld [vmem:[#allocation5 + $0xa0] sm:$0xff]
    %v93 = vld [vmem:[#allocation5 + $0xa8] sm:$0xff]
    %v94 = vld [vmem:[#allocation5 + $0xb0] sm:$0xff]
    %v95 = vld [vmem:[#allocation5 + $0xb8] sm:$0xff]
    %v96 = vld [vmem:[#allocation5 + $0xc0] sm:$0xff]
    %v97 = vld [vmem:[#allocation5 + $0xc8] sm:$0xff]
    %v98 = vld [vmem:[#allocation5 + $0xd0] sm:$0xff]
    %v99 = vld [vmem:[#allocation5 + $0xd8] sm:$0xff]
    %v100 = vld [vmem:[#allocation5 + $0xe0] sm:$0xff]
    %v101 = vld [vmem:[#allocation5 + $0xe8] sm:$0xff]
    %v102 = vld [vmem:[#allocation5 + $0xf0] sm:$0xff]
    %v103 = vld [vmem:[#allocation5 + $0xf8] sm:$0xff]
    %v104 = vld [vmem:[#allocation5 + $0x100] sm:$0xff]
    %v105 = vld [vmem:[#allocation5 + $0x108] sm:$0xff]
    %v106 = vld [vmem:[#allocation5 + $0x110] sm:$0xff]
    %v107 = vld [vmem:[#allocation5 + $0x118] sm:$0xff]
    %v108 = vld [vmem:[#allocation5 + $0x120] sm:$0xff]
    %v109 = vld [vmem:[#allocation5 + $0x128] sm:$0xff]
    %v110 = vld [vmem:[#allocation5 + $0x130] sm:$0xff]
    %v111 = vld [vmem:[#allocation5 + $0x138] sm:$0xff]
    %v112 = vld [vmem:[#allocation5 + $0x140] sm:$0xff]
    %v113 = vld [vmem:[#allocation5 + $0x148] sm:$0xff]
    %v114 = vld [vmem:[#allocation5 + $0x150] sm:$0xff]
    %v115 = vld [vmem:[#allocation5 + $0x158] sm:$0xff]
    %v116 = vld [vmem:[#allocation5 + $0x160] sm:$0xff]
    %v117 = vld [vmem:[#allocation5 + $0x168] sm:$0xff]
    %v118 = vld [vmem:[#allocation5 + $0x170] sm:$0xff]
    %v119 = vld [vmem:[#allocation5 + $0x178] sm:$0xff]
    %v120 = vld [vmem:[#allocation5 + $0x180] sm:$0xff]
    %v121 = vld [vmem:[%s2] sm:$0x3]
    %v123 = vlaneseq
    %v124 = vshrl.u32 %v123, 7
    %v125 = vsub.s32 0, %v124
    %v126 = vrot.slane %v121, %v125
    %v127 = vlaneseq
    %v128 = vshrl.u32 %v127, 7
    %v129 = vsub.s32 1, %v128
    %v130 = vrot.slane %v121, %v129
    %v182 = vunpack.c.l.b16 %v72
    %v183 = vunpack.c.h.b16 %v72
    %v184 = vunpack.c.l.b16 %v73
    %v185 = vunpack.c.h.b16 %v73
    %v186 = vunpack.c.l.b16 %v74
    %v187 = vunpack.c.h.b16 %v74
    %v188 = vunpack.c.l.b16 %v75
    %v189 = vunpack.c.h.b16 %v75
    %v190 = vunpack.c.l.b16 %v76
    %v191 = vunpack.c.h.b16 %v76
    %v192 = vunpack.c.l.b16 %v77
    %v193 = vunpack.c.h.b16 %v77
    %v194 = vunpack.c.l.b16 %v78
    %v195 = vunpack.c.h.b16 %v78
    %v196 = vunpack.c.l.b16 %v79
    %v197 = vunpack.c.h.b16 %v79
    %v198 = vunpack.c.l.b16 %v80
    %v199 = vunpack.c.h.b16 %v80
    %v200 = vunpack.c.l.b16 %v81
    %v201 = vunpack.c.h.b16 %v81
    %v202 = vunpack.c.l.b16 %v82
    %v203 = vunpack.c.h.b16 %v82
    %v204 = vunpack.c.l.b16 %v83
    %v205 = vunpack.c.h.b16 %v83
    %v206 = vunpack.c.l.b16 %v84
    %v207 = vunpack.c.h.b16 %v84
    %v208 = vunpack.c.l.b16 %v85
    %v209 = vunpack.c.h.b16 %v85
    %v210 = vunpack.c.l.b16 %v86
    %v211 = vunpack.c.h.b16 %v86
    %v212 = vunpack.c.l.b16 %v87
    %v213 = vunpack.c.h.b16 %v87
    %v214 = vunpack.c.l.b16 %v88
    %v215 = vunpack.c.h.b16 %v88
    %v216 = vunpack.c.l.b16 %v89
    %v217 = vunpack.c.h.b16 %v89
    %v218 = vunpack.c.l.b16 %v90
    %v219 = vunpack.c.h.b16 %v90
    %v220 = vunpack.c.l.b16 %v91
    %v221 = vunpack.c.h.b16 %v91
    %v222 = vunpack.c.l.b16 %v92
    %v223 = vunpack.c.h.b16 %v92
    %v224 = vunpack.c.l.b16 %v93
    %v225 = vunpack.c.h.b16 %v93
    %v226 = vunpack.c.l.b16 %v94
    %v227 = vunpack.c.h.b16 %v94
    %v228 = vunpack.c.l.b16 %v95
    %v229 = vunpack.c.h.b16 %v95
    %v230 = vunpack.c.l.b16 %v96
    %v231 = vunpack.c.h.b16 %v96
    %v232 = vunpack.c.l.b16 %v97
    %v233 = vunpack.c.h.b16 %v97
    %v234 = vunpack.c.l.b16 %v98
    %v235 = vunpack.c.h.b16 %v98
    %v236 = vunpack.c.l.b16 %v99
    %v237 = vunpack.c.h.b16 %v99
    %v238 = vunpack.c.l.b16 %v100
    %v239 = vunpack.c.h.b16 %v100
    %v240 = vunpack.c.l.b16 %v101
    %v241 = vunpack.c.h.b16 %v101
    %v242 = vunpack.c.l.b16 %v102
    %v243 = vunpack.c.h.b16 %v102
    %v244 = vunpack.c.l.b16 %v103
    %v245 = vunpack.c.h.b16 %v103
    %v246 = vunpack.c.l.b16 %v104
    %v247 = vunpack.c.h.b16 %v104
    %v248 = vunpack.c.l.b16 %v105
    %v249 = vunpack.c.h.b16 %v105
    %v250 = vunpack.c.l.b16 %v106
    %v251 = vunpack.c.h.b16 %v106
    %v252 = vunpack.c.l.b16 %v107
    %v253 = vunpack.c.h.b16 %v107
    %v254 = vunpack.c.l.b16 %v108
    %v255 = vunpack.c.h.b16 %v108
    %v256 = vunpack.c.l.b16 %v109
    %v257 = vunpack.c.h.b16 %v109
    %v258 = vunpack.c.l.b16 %v110
    %v259 = vunpack.c.h.b16 %v110
    %v260 = vunpack.c.l.b16 %v111
    %v261 = vunpack.c.h.b16 %v111
    %v262 = vunpack.c.l.b16 %v112
    %v263 = vunpack.c.h.b16 %v112
    %v264 = vunpack.c.l.b16 %v113
    %v265 = vunpack.c.h.b16 %v113
    %v266 = vunpack.c.l.b16 %v114
    %v267 = vunpack.c.h.b16 %v114
    %v268 = vunpack.c.l.b16 %v115
    %v269 = vunpack.c.h.b16 %v115
    %v270 = vunpack.c.l.b16 %v116
    %v271 = vunpack.c.h.b16 %v116
    %v272 = vunpack.c.l.b16 %v117
    %v273 = vunpack.c.h.b16 %v117
    %v274 = vunpack.c.l.b16 %v118
    %v275 = vunpack.c.h.b16 %v118
    %v276 = vunpack.c.l.b16 %v119
    %v277 = vunpack.c.h.b16 %v119
    %v278 = vunpack.c.l.b16 %v120
    %v279 = vunpack.c.h.b16 %v120
    %v280 = vpack.c.b16 %v184, %v182
    %v281 = vpack.c.b16 %v185, %v183
    %v282 = vpack.c.b16 %v188, %v186
    %v283 = vpack.c.b16 %v189, %v187
    %v284 = vpack.c.b16 %v192, %v190
    %v285 = vpack.c.b16 %v193, %v191
    %v286 = vpack.c.b16 %v196, %v194
    %v287 = vpack.c.b16 %v197, %v195
    %v288 = vpack.c.b16 %v200, %v198
    %v289 = vpack.c.b16 %v201, %v199
    %v290 = vpack.c.b16 %v204, %v202
    %v291 = vpack.c.b16 %v205, %v203
    %v292 = vpack.c.b16 %v208, %v206
    %v293 = vpack.c.b16 %v209, %v207
    %v294 = vpack.c.b16 %v212, %v210
    %v295 = vpack.c.b16 %v213, %v211
    %v296 = vpack.c.b16 %v216, %v214
    %v297 = vpack.c.b16 %v217, %v215
    %v298 = vpack.c.b16 %v220, %v218
    %v299 = vpack.c.b16 %v221, %v219
    %v300 = vpack.c.b16 %v224, %v222
    %v301 = vpack.c.b16 %v225, %v223
    %v302 = vpack.c.b16 %v228, %v226
    %v303 = vpack.c.b16 %v229, %v227
    %v304 = vpack.c.b16 %v232, %v230
    %v305 = vpack.c.b16 %v233, %v231
    %v306 = vpack.c.b16 %v236, %v234
    %v307 = vpack.c.b16 %v237, %v235
    %v308 = vpack.c.b16 %v240, %v238
    %v309 = vpack.c.b16 %v241, %v239
    %v310 = vpack.c.b16 %v244, %v242
    %v311 = vpack.c.b16 %v245, %v243
    %v312 = vpack.c.b16 %v248, %v246
    %v313 = vpack.c.b16 %v249, %v247
    %v314 = vpack.c.b16 %v252, %v250
    %v315 = vpack.c.b16 %v253, %v251
    %v316 = vpack.c.b16 %v256, %v254
    %v317 = vpack.c.b16 %v257, %v255
    %v318 = vpack.c.b16 %v260, %v258
    %v319 = vpack.c.b16 %v261, %v259
    %v320 = vpack.c.b16 %v264, %v262
    %v321 = vpack.c.b16 %v265, %v263
    %v322 = vpack.c.b16 %v268, %v266
    %v323 = vpack.c.b16 %v269, %v267
    %v324 = vpack.c.b16 %v272, %v270
    %v325 = vpack.c.b16 %v273, %v271
    %v326 = vpack.c.b16 %v276, %v274
    %v327 = vpack.c.b16 %v277, %v275
    %v328 = vpack.c.b16 %v278, %v278
    %v329 = vpack.c.b16 %v279, %v279
    %vm378 = vcmask 64512
    %v380 = vsel %vm378, %v71, 0
    %vm382 = vcmask 1043456
    %v384 = vsel %vm382, %v328, 0
    %v387 = vsel %vm382, %v329, 0
    %389 = vmatprep.subr.bf16.mxu0 %v281
    %390 = vmatpush1.bf16.msra.mxu0 %v280
    %391 = vmatprep.subr.bf16.mxu0 %v283
    %392 = vmatpush1.bf16.msra.mxu0 %v282
    %393 = vmatprep.subr.bf16.mxu0 %v285
    %394 = vmatpush1.bf16.msra.mxu0 %v284
    %395 = vmatprep.subr.bf16.mxu0 %v287
    %396 = vmatpush1.bf16.msra.mxu0 %v286
    %397 = vmatprep.subr.bf16.mxu0 %v289
    %398 = vmatpush1.bf16.msra.mxu0 %v288
    %399 = vmatprep.subr.bf16.mxu0 %v291
    %400 = vmatpush1.bf16.msra.mxu0 %v290
    %401 = vmatprep.subr.bf16.mxu0 %v293
    %402 = vmatpush1.bf16.msra.mxu0 %v292
    %403 = vmatprep.subr.bf16.mxu0 %v295
    %404 = vmatpush1.bf16.msra.mxu0 %v294
    %405 = vmatprep.subr.bf16.mxu0 %v297
    %406 = vmatpush1.bf16.msra.mxu0 %v296
    %407 = vmatprep.subr.bf16.mxu0 %v299
    %408 = vmatpush1.bf16.msra.mxu0 %v298
    %409 = vmatprep.subr.bf16.mxu0 %v301
    %410 = vmatpush1.bf16.msra.mxu0 %v300
    %411 = vmatprep.subr.bf16.mxu0 %v303
    %412 = vmatpush1.bf16.msra.mxu0 %v302
    %413 = vmatprep.subr.bf16.mxu0 %v305
    %414 = vmatpush1.bf16.msra.mxu0 %v304
    %415 = vmatprep.subr.bf16.mxu0 %v307
    %416 = vmatpush1.bf16.msra.mxu0 %v306
    %417 = vmatprep.subr.bf16.mxu0 %v309
    %418 = vmatpush1.bf16.msra.mxu0 %v308
    %419 = vmatprep.subr.bf16.mxu0 %v311
    %420 = vmatpush1.bf16.msra.mxu0 %v310
    %421 = vmatprep.mubr.bf16.mxu0 %v69
    %422 = vmatmul.mubr.bf16.gmra.mrb[0].mxu0 %v68
    %v423 = vpop.f32.mrb[0].mxu0
    %v424 = vadd.f32 %v126, %v423
    %v425 = vpop.f32.mrb[0].mxu0
    %v426 = vadd.f32 %v130, %v425
    %v427 = vpop.f32.mrb[0].mxu0
    %v428 = vpop.f32.mrb[0].mxu0
    %429 = vdwg.mxu0
    %430 = vmatprep.subr.bf16.mxu0 %v313
    %431 = vmatpush1.bf16.msra.mxu0 %v312
    %432 = vmatprep.subr.bf16.mxu0 %v315
    %433 = vmatpush1.bf16.msra.mxu0 %v314
    %434 = vmatprep.subr.bf16.mxu0 %v317
    %435 = vmatpush1.bf16.msra.mxu0 %v316
    %436 = vmatprep.subr.bf16.mxu0 %v319
    %437 = vmatpush1.bf16.msra.mxu0 %v318
    %438 = vmatprep.subr.bf16.mxu0 %v321
    %439 = vmatpush1.bf16.msra.mxu0 %v320
    %440 = vmatprep.subr.bf16.mxu0 %v323
    %441 = vmatpush1.bf16.msra.mxu0 %v322
    %442 = vmatprep.subr.bf16.mxu0 %v325
    %443 = vmatpush1.bf16.msra.mxu0 %v324
    %444 = vmatprep.subr.bf16.mxu0 %v327
    %445 = vmatpush1.bf16.msra.mxu0 %v326
    %446 = vmatprep.subr.bf16.mxu0 %v387
    %447 = vmatpush1.bf16.msra.mxu0 %v384
    %448 = vmatprep.subr.bf16.mxu0 0
    %449 = vmatpush1.bf16.msra.mxu0 0
    %450 = vmatprep.subr.bf16.mxu0 0
    %451 = vmatpush1.bf16.msra.mxu0 0
    %452 = vmatprep.subr.bf16.mxu0 0
    %453 = vmatpush1.bf16.msra.mxu0 0
    %454 = vmatprep.subr.bf16.mxu0 0
    %455 = vmatpush1.bf16.msra.mxu0 0
    %456 = vmatprep.subr.bf16.mxu0 0
    %457 = vmatpush1.bf16.msra.mxu0 0
    %458 = vmatprep.subr.bf16.mxu0 0
    %459 = vmatpush1.bf16.msra.mxu0 0
    %460 = vmatprep.subr.bf16.mxu0 0
    %461 = vmatpush1.bf16.msra.mxu0 0
    %462 = vmatprep.mubr.bf16.mxu0 %v380
    %463 = vmatmul.mubr.bf16.gmra.mrb[0].mxu0 %v70
    %v464 = vpop.f32.mrb[0].mxu0
    %v465 = vadd.f32 %v424, %v464
    %v466 = vpop.f32.mrb[0].mxu0
    %v467 = vadd.f32 %v426, %v466
    %v468 = vpop.f32.mrb[0].mxu0
    %v469 = vpop.f32.mrb[0].mxu0
    %470 = vdwg.mxu0
    %v471 = vmax.f32 %v465, 0.0
    %v472 = vmax.f32 %v467, 0.0
    %473 = vst [vmem:[#allocation8] sm:$0xff] %v471
    %474 = vst [vmem:[#allocation8 + $0x8] sm:$0xff] %v472
    %v475 = vpack.c.bf16 %v471, %v471
    %v476 = vpack.c.bf16 %v472, %v472
    %v477 = vld [vmem:[#allocation7] sm:$0xf]
    %v478 = vld [vmem:[#allocation7 + $0x4] sm:$0xf]
    %v479 = vld [vmem:[#allocation7 + $0x8] sm:$0xf]
    %v480 = vld [vmem:[#allocation7 + $0xc] sm:$0xf]
    %v481 = vld [vmem:[#allocation7 + $0x10] sm:$0xf]
    %v482 = vld [vmem:[#allocation7 + $0x14] sm:$0xf]
    %v483 = vld [vmem:[#allocation7 + $0x18] sm:$0xf]
    %v484 = vld [vmem:[#allocation7 + $0x1c] sm:$0xf]
    %v485 = vld [vmem:[#allocation7 + $0x20] sm:$0xf]
    %v486 = vld [vmem:[#allocation7 + $0x24] sm:$0xf]
    %v487 = vld [vmem:[#allocation7 + $0x28] sm:$0xf]
    %v488 = vld [vmem:[#allocation7 + $0x2c] sm:$0xf]
    %v489 = vld [vmem:[#allocation7 + $0x30] sm:$0xf]
    %v490 = vld [vmem:[#allocation7 + $0x34] sm:$0xf]
    %v491 = vld [vmem:[#allocation7 + $0x38] sm:$0xf]
    %v492 = vld [vmem:[#allocation7 + $0x3c] sm:$0xf]
    %v493 = vld [vmem:[#allocation7 + $0x40] sm:$0xf]
    %v494 = vld [vmem:[#allocation7 + $0x44] sm:$0xf]
    %v495 = vld [vmem:[#allocation7 + $0x48] sm:$0xf]
    %v496 = vld [vmem:[#allocation7 + $0x4c] sm:$0xf]
    %v497 = vld [vmem:[#allocation7 + $0x50] sm:$0xf]
    %v498 = vld [vmem:[#allocation7 + $0x54] sm:$0xf]
    %v499 = vld [vmem:[#allocation7 + $0x58] sm:$0xf]
    %v500 = vld [vmem:[#allocation7 + $0x5c] sm:$0xf]
    %v501 = vld [vmem:[#allocation7 + $0x60] sm:$0xf]
    %v502 = vld [vmem:[#allocation7 + $0x64] sm:$0xf]
    %v503 = vld [vmem:[#allocation7 + $0x68] sm:$0xf]
    %v504 = vld [vmem:[#allocation7 + $0x6c] sm:$0xf]
    %v505 = vld [vmem:[#allocation7 + $0x70] sm:$0xf]
    %v506 = vld [vmem:[#allocation7 + $0x74] sm:$0xf]
    %v507 = vld [vmem:[#allocation7 + $0x78] sm:$0xf]
    %v508 = vld [vmem:[#allocation7 + $0x7c] sm:$0xf]
    %v509 = vld [vmem:[%s4] sm:$0x1]
    %v511 = vlaneseq
    %v512 = vshrl.u32 %v511, 7
    %v513 = vsub.s32 0, %v512
    %v514 = vrot.slane %v509, %v513
    %v548 = vunpack.c.l.b16 %v477
    %v549 = vunpack.c.l.b16 %v478
    %v550 = vunpack.c.l.b16 %v479
    %v551 = vunpack.c.l.b16 %v480
    %v552 = vunpack.c.l.b16 %v481
    %v553 = vunpack.c.l.b16 %v482
    %v554 = vunpack.c.l.b16 %v483
    %v555 = vunpack.c.l.b16 %v484
    %v556 = vunpack.c.l.b16 %v485
    %v557 = vunpack.c.l.b16 %v486
    %v558 = vunpack.c.l.b16 %v487
    %v559 = vunpack.c.l.b16 %v488
    %v560 = vunpack.c.l.b16 %v489
    %v561 = vunpack.c.l.b16 %v490
    %v562 = vunpack.c.l.b16 %v491
    %v563 = vunpack.c.l.b16 %v492
    %v564 = vunpack.c.l.b16 %v493
    %v565 = vunpack.c.l.b16 %v494
    %v566 = vunpack.c.l.b16 %v495
    %v567 = vunpack.c.l.b16 %v496
    %v568 = vunpack.c.l.b16 %v497
    %v569 = vunpack.c.l.b16 %v498
    %v570 = vunpack.c.l.b16 %v499
    %v571 = vunpack.c.l.b16 %v500
    %v572 = vunpack.c.l.b16 %v501
    %v573 = vunpack.c.l.b16 %v502
    %v574 = vunpack.c.l.b16 %v503
    %v575 = vunpack.c.l.b16 %v504
    %v576 = vunpack.c.l.b16 %v505
    %v577 = vunpack.c.l.b16 %v506
    %v578 = vunpack.c.l.b16 %v507
    %v579 = vunpack.c.l.b16 %v508
    %v580 = vpack.c.b16 %v549, %v548
    %v581 = vpack.c.b16 %v551, %v550
    %v582 = vpack.c.b16 %v553, %v552
    %v583 = vpack.c.b16 %v555, %v554
    %v584 = vpack.c.b16 %v557, %v556
    %v585 = vpack.c.b16 %v559, %v558
    %v586 = vpack.c.b16 %v561, %v560
    %v587 = vpack.c.b16 %v563, %v562
    %v588 = vpack.c.b16 %v565, %v564
    %v589 = vpack.c.b16 %v567, %v566
    %v590 = vpack.c.b16 %v569, %v568
    %v591 = vpack.c.b16 %v571, %v570
    %v592 = vpack.c.b16 %v573, %v572
    %v593 = vpack.c.b16 %v575, %v574
    %v594 = vpack.c.b16 %v577, %v576
    %v595 = vpack.c.b16 %v579, %v578
    %612 = vmatprep.subr.bf16.mxu0 0
    %613 = vmatpush1.bf16.msra.mxu0 %v580
    %614 = vmatprep.subr.bf16.mxu0 0
    %615 = vmatpush1.bf16.msra.mxu0 %v581
    %616 = vmatprep.subr.bf16.mxu0 0
    %617 = vmatpush1.bf16.msra.mxu0 %v582
    %618 = vmatprep.subr.bf16.mxu0 0
    %619 = vmatpush1.bf16.msra.mxu0 %v583
    %620 = vmatprep.subr.bf16.mxu0 0
    %621 = vmatpush1.bf16.msra.mxu0 %v584
    %622 = vmatprep.subr.bf16.mxu0 0
    %623 = vmatpush1.bf16.msra.mxu0 %v585
    %624 = vmatprep.subr.bf16.mxu0 0
    %625 = vmatpush1.bf16.msra.mxu0 %v586
    %626 = vmatprep.subr.bf16.mxu0 0
    %627 = vmatpush1.bf16.msra.mxu0 %v587
    %628 = vmatprep.subr.bf16.mxu0 0
    %629 = vmatpush1.bf16.msra.mxu0 %v588
    %630 = vmatprep.subr.bf16.mxu0 0
    %631 = vmatpush1.bf16.msra.mxu0 %v589
    %632 = vmatprep.subr.bf16.mxu0 0
    %633 = vmatpush1.bf16.msra.mxu0 %v590
    %634 = vmatprep.subr.bf16.mxu0 0
    %635 = vmatpush1.bf16.msra.mxu0 %v591
    %636 = vmatprep.subr.bf16.mxu0 0
    %637 = vmatpush1.bf16.msra.mxu0 %v592
    %638 = vmatprep.subr.bf16.mxu0 0
    %639 = vmatpush1.bf16.msra.mxu0 %v593
    %640 = vmatprep.subr.bf16.mxu0 0
    %641 = vmatpush1.bf16.msra.mxu0 %v594
    %642 = vmatprep.subr.bf16.mxu0 0
    %643 = vmatpush1.bf16.msra.mxu0 %v595
    %644 = vmatprep.mubr.bf16.mxu0 %v476
    %645 = vmatmul.mubr.bf16.gmra.mrb[0].mxu0 %v475
    %v646 = vpop.f32.mrb[0].mxu0
    %v647 = vadd.f32 %v514, %v646
    %v648 = vpop.f32.mrb[0].mxu0
    %v649 = vpop.f32.mrb[0].mxu0
    %v650 = vpop.f32.mrb[0].mxu0
    %651 = vdwg.mxu0
    %652 = vst [vmem:[#allocation9] sm:$0xff] %v647
    // Predicated region
    $region34: #{tpu_custom_call.1} parent=1 // pred_check
      _
    $region35: #{tpu_custom_call.1} parent=1 // pred_check_branch
      %654 = sbr.rel (0) target = $region37
    $region36: #{tpu_custom_call.1} parent=1 // pred_region
      %s656 = ssub.s32 256, 256
      %657 = vsyncadd [#allocation4], %s656
      %s659 = sshll.u32 [#allocation8], 4
      %s660 = int_to_ptr.vmem [resolvable:$true] %s659
      %662 = dma.vmem_to_hbm [thread:$0]  %s660, 256, %s5, [#allocation4]
    $region37: #{tpu_custom_call.1} parent=1 // pred_fallthru
      _
    // Predicated region
    $region38: #{tpu_custom_call.1} parent=1 // pred_check
      _
    $region39: #{tpu_custom_call.1} parent=1 // pred_check_branch
      %664 = sbr.rel (0) target = $region41
    $region40: #{tpu_custom_call.1} parent=1 // pred_region
      %s666 = ssub.s32 128, 128
      %667 = vsyncadd [#allocation10], %s666
      %s669 = sshll.u32 [#allocation9], 4
      %s670 = int_to_ptr.vmem [resolvable:$true] %s669
      %672 = dma.vmem_to_hbm [thread:$0]  %s670, 128, %s6, [#allocation10]
    $region41: #{tpu_custom_call.1} parent=1 // pred_fallthru
      _
    // Predicated region
    $region42: #{tpu_custom_call.1} parent=1 // pred_check
      _
    $region43: #{tpu_custom_call.1} parent=1 // pred_check_branch
      %674 = sbr.rel (0) target = $region45
    $region44: #{tpu_custom_call.1} parent=1 // pred_region
      %675 = dma.done [#allocation4], 256
    $region45: #{tpu_custom_call.1} parent=1 // pred_fallthru
      _
    // Predicated region
    $region46: #{tpu_custom_call.1} parent=1 // pred_check
      _
    $region47: #{tpu_custom_call.1} parent=1 // pred_check_branch
      %677 = sbr.rel (0) target = $region49
    $region48: #{tpu_custom_call.1} parent=1 // pred_region
      %678 = dma.done [#allocation10], 128
    $region49: #{tpu_custom_call.1} parent=1 // pred_fallthru
      _
    %679 = vsyncpa [#allocation3], 1
    %680 = vsyncpa [#allocation6], 1
    %681 = vsyncpa [#allocation4], 1
    %682 = vsyncpa [#allocation10], 1

</llo_original>
